<compile_context>
chip_gen: v7x
topology: tpu7x:2x2x1
jax: 0.10.0
libtpu: 0.0.40
codegen_flags: <defaults>
</compile_context>

<pallas_src>
import jax
import jax.numpy as jnp
from jax.experimental import pallas as pl
from jax.experimental.pallas import tpu as pltpu


CLASSIFIER_HIDDEN_SIZE = 187  # matches gordon.py


def _round_up(n, m):
    return ((n + m - 1) // m) * m


def _cdiv(a, b):
    return -(-a // b)


def _stage1_kernel(xT_ref, w1T_ref, b1_ref, w2_ref, b2_ref, o_ref):
    # fc1: [Hp, D] @ [D, TB] -> [Hp, TB], bf16 inputs, f32 accumulation (MXU).
    h = jnp.dot(w1T_ref[...], xT_ref[...], preferred_element_type=jnp.float32)
    # Bias (lane-broadcast of [Hp, 1]) + ReLU in f32; padded hidden rows stay 0.
    h = jnp.maximum(h + b1_ref[...], 0.0)
    # TODO(synk): dropout is identity in inference mode; training-mode masking
    # (pltpu.prng_random_bits + scale by 1/(1-p)) is intentionally omitted.
    # fc2 as a K=Hp MXU matmul: [8, Hp] @ [Hp, TB] -> [8, TB]; row 0 carries
    # the real logit (rows 1..7 of w2_ref are zero padding).
    z = jnp.dot(w2_ref[...], h.astype(w2_ref.dtype),
                preferred_element_type=jnp.float32)
    logit = z[0:1, :] + b2_ref[0, 0]
    # Sigmoid on a lane-dense [1, TB] row; reciprocal goes to the EUP slot.
    o_ref[...] = pl.reciprocal(1.0 + jnp.exp(-logit), approx=True)


def prepare_params(w1, b1, w2, b2, matmul_dtype=jnp.bfloat16):
    """One-time preprocessing (pad / transpose / cast) hoisted out of the call path.

    w1: [D, H]; b1: [1, H] (or [H]); w2: [H, 1] (or [H]); b2: [1, 1] (or scalar).
    """
    D, H = w1.shape
    Hp = _round_up(H, 128)
    w1T = jnp.pad(w1, ((0, 0), (0, Hp - H))).T.astype(matmul_dtype)          # [Hp, D]
    b1c = jnp.pad(b1.reshape(1, H), ((0, 0), (0, Hp - H))).T \
             .astype(jnp.float32)                                            # [Hp, 1]
    w2r = jnp.pad(w2.reshape(1, H), ((0, 7), (0, Hp - H))) \
             .astype(matmul_dtype)                                           # [8, Hp]
    b2s = jnp.asarray(b2, jnp.float32).reshape(1, 1)                         # [1, 1]
    return {"w1T": w1T, "b1": b1c, "w2": w2r, "b2": b2s}


def _choose_tiling(B, tb):
    """Balanced batch tiling: small tail waste, >=2 steps when B is large enough."""
    grid_n = max(_cdiv(B, tb), 1)
    if B >= 256:
        # v7x megacore: keep at least 2 grid steps so the second TC gets work.
        grid_n = max(grid_n, 2)
    tb_eff = _round_up(_cdiv(B, grid_n), 128)   # lane-dense tile on the batch axis
    grid_n = max(_cdiv(B, tb_eff), 1)
    Bp = grid_n * tb_eff
    return tb_eff, grid_n, Bp


def stage1_classifier(x, params, *, tb=4096):
    """x: [B, D] f32; params: output of prepare_params(). Returns [B, 1] f32."""
    B, D = x.shape
    w1T, b1, w2, b2 = params["w1T"], params["b1"], params["w2"], params["b2"]
    Hp = w1T.shape[0]
    assert w1T.shape == (Hp, D)

    tb_eff, grid_n, Bp = _choose_tiling(B, tb)

    # Batch-on-lanes input: [D, Bp] in the matmul dtype (half the DMA bytes).
    xT = x.astype(w1T.dtype).T
    if Bp != B:
        xT = jnp.pad(xT, ((0, 0), (0, Bp - B)))

    out = pl.pallas_call(
        _stage1_kernel,
        out_shape=jax.ShapeDtypeStruct((1, Bp), jnp.float32),
        grid=(grid_n,),
        in_specs=[
            pl.BlockSpec((D, tb_eff), lambda i: (0, i)),   # x^T: tiled over batch lanes
            pl.BlockSpec((Hp, D), lambda i: (0, 0)),       # w1^T: resident
            pl.BlockSpec((Hp, 1), lambda i: (0, 0)),       # b1 column: resident
            pl.BlockSpec((8, Hp), lambda i: (0, 0)),       # w2 rows (row 0 real): resident
            pl.BlockSpec(memory_space=pltpu.SMEM),         # b2: scalar in SMEM
        ],
        out_specs=pl.BlockSpec((1, tb_eff), lambda i: (0, i)),  # lane-dense output row
        compiler_params=pltpu.CompilerParams(
            dimension_semantics=("parallel",)),
    )(xT, w1T, b1, w2, b2)

    return out[0, :B].reshape(B, 1)


def init_params(key, input_size, hidden_size=CLASSIFIER_HIDDEN_SIZE):
    """Deterministic init mimicking nn.Linear's uniform(-1/sqrt(fan_in), 1/sqrt(fan_in))."""
    k1, k2, k3, k4 = jax.random.split(key, 4)
    bound1 = 1.0 / jnp.sqrt(jnp.float32(input_size))
    bound2 = 1.0 / jnp.sqrt(jnp.float32(hidden_size))
    w1 = jax.random.uniform(k1, (input_size, hidden_size), jnp.float32, -bound1, bound1)
    b1 = jax.random.uniform(k2, (1, hidden_size), jnp.float32, -bound1, bound1)
    w2 = jax.random.uniform(k3, (hidden_size, 1), jnp.float32, -bound2, bound2)
    b2 = jax.random.uniform(k4, (1, 1), jnp.float32, -bound2, bound2)
    return w1, b1, w2, b2


def _reference(x, w1, b1, w2, b2):
    return jax.nn.sigmoid(jnp.maximum(x @ w1 + b1, 0.0) @ w2 + b2)


if __name__ == "__main__":
    key = jax.random.PRNGKey(0)
    k_x, k_x2, k_p = jax.random.split(key, 3)

    input_size = 32
    w1, b1, w2, b2 = init_params(k_p, input_size)
    params = prepare_params(w1, b1, w2, b2)   # one-time pad/transpose/cast

    # Small demo case (B=2, like the module's typical tiny usage).
    x = jax.random.normal(k_x, (2, input_size), jnp.float32)
    out = jax.block_until_ready(stage1_classifier(x, params))
    ref = _reference(x, w1, b1, w2, b2)
    assert out.shape == (2, 1)
    assert jnp.allclose(out, ref, atol=2e-2, rtol=2e-2), (
        f"max abs err {jnp.max(jnp.abs(out - ref))}")

    # Exercise batch tiling + tail handling: B=300 with a 128-lane tile (grid=3).
    x2 = jax.random.normal(k_x2, (300, input_size), jnp.float32)
    out2 = jax.block_until_ready(stage1_classifier(x2, params, tb=128))
    ref2 = _reference(x2, w1, b1, w2, b2)
    assert out2.shape == (300, 1)
    assert jnp.allclose(out2, ref2, atol=2e-2, rtol=2e-2), (
        f"max abs err {jnp.max(jnp.abs(out2 - ref2))}")

    print("KERNEL_OK")
</pallas_src>

<mosaic_0001>
module attributes {stable_mosaic.version = 11 : i64} {
  func.func @_stage1_kernel(%arg0: i32, %arg1: memref<32x128xbf16, #tpu.memory_space<vmem>>, %arg2: memref<256x32xbf16, #tpu.memory_space<vmem>>, %arg3: memref<256x1xf32, #tpu.memory_space<vmem>>, %arg4: memref<8x256xbf16, #tpu.memory_space<vmem>>, %arg5: memref<1x1xf32, #tpu.memory_space<smem>>, %arg6: memref<1x128xf32, #tpu.memory_space<vmem>>) attributes {dimension_semantics = [#tpu.dimension_semantics<parallel>], iteration_bounds = array<i64: 1>, scalar_prefetch = 0 : i64, scratch_operands = 0 : i64, tpu.core_type = #tpu.core_type<tc>, window_params = [{transform_indices = @transform_0, window_bounds = array<i64: 32, 128>}, {pipeline_mode = #tpu.pipeline_mode<synchronous>, transform_indices = @transform_1, window_bounds = array<i64: 256, 32>}, {pipeline_mode = #tpu.pipeline_mode<synchronous>, transform_indices = @transform_2, window_bounds = array<i64: 256, 1>}, {pipeline_mode = #tpu.pipeline_mode<synchronous>, transform_indices = @transform_3, window_bounds = array<i64: 8, 256>}, {transform_indices = @transform_4, window_bounds = array<i64: 1, 1>}, {transform_indices = @transform_5, window_bounds = array<i64: 1, 128>}]} {
    %c0 = arith.constant 0 : index
    %c0_0 = arith.constant 0 : index
    %0 = vector.load %arg2[%c0, %c0_0] : memref<256x32xbf16, #tpu.memory_space<vmem>>, vector<256x32xbf16>
    %c0_1 = arith.constant 0 : index
    %c0_2 = arith.constant 0 : index
    %1 = vector.load %arg1[%c0_1, %c0_2] : memref<32x128xbf16, #tpu.memory_space<vmem>>, vector<32x128xbf16>
    %cst = arith.constant dense<0.000000e+00> : vector<256x128xf32>
    %2 = tpu.matmul %0, %1, %cst {dimension_numbers = #tpu.dot_dimension_numbers<[1], [0], [0], [1], [0, 0, 1, 1], [], []>} : vector<256x32xbf16>, vector<32x128xbf16>, vector<256x128xf32> -> vector<256x128xf32>
    %c0_3 = arith.constant 0 : index
    %c0_4 = arith.constant 0 : index
    %3 = vector.load %arg3[%c0_3, %c0_4] : memref<256x1xf32, #tpu.memory_space<vmem>>, vector<256x1xf32>
    %4 = vector.broadcast %3 : vector<256x1xf32> to vector<256x128xf32>
    %5 = arith.addf %2, %4 : vector<256x128xf32>
    %cst_5 = arith.constant 0.000000e+00 : f32
    %6 = vector.broadcast %cst_5 : f32 to vector<256x128xf32>
    %7 = arith.maximumf %5, %6 : vector<256x128xf32>
    %c0_6 = arith.constant 0 : index
    %c0_7 = arith.constant 0 : index
    %8 = vector.load %arg4[%c0_6, %c0_7] : memref<8x256xbf16, #tpu.memory_space<vmem>>, vector<8x256xbf16>
    %9 = arith.truncf %7 : vector<256x128xf32> to vector<256x128xbf16>
    %cst_8 = arith.constant dense<0.000000e+00> : vector<8x128xf32>
    %10 = tpu.matmul %8, %9, %cst_8 {dimension_numbers = #tpu.dot_dimension_numbers<[1], [0], [0], [1], [0, 0, 1, 1], [], []>} : vector<8x256xbf16>, vector<256x128xbf16>, vector<8x128xf32> -> vector<8x128xf32>
    %11 = vector.extract_strided_slice %10 {offsets = [0, 0], sizes = [1, 128], strides = [1, 1]} : vector<8x128xf32> to vector<1x128xf32>
    %c0_9 = arith.constant 0 : index
    %c0_10 = arith.constant 0 : index
    %12 = memref.load %arg5[%c0_9, %c0_10] : memref<1x1xf32, #tpu.memory_space<smem>>
    %13 = vector.broadcast %12 : f32 to vector<1x128xf32>
    %14 = arith.addf %11, %13 : vector<1x128xf32>
    %cst_11 = arith.constant 0.000000e+00 : f32
    %15 = vector.broadcast %cst_11 : f32 to vector<1x128xf32>
    %16 = arith.subf %15, %14 : vector<1x128xf32>
    %17 = math.exp %16 : vector<1x128xf32>
    %cst_12 = arith.constant 1.000000e+00 : f32
    %18 = vector.broadcast %cst_12 : f32 to vector<1x128xf32>
    %19 = arith.addf %18, %17 : vector<1x128xf32>
    %20 = tpu.reciprocal %19 {approx = true} : vector<1x128xf32> -> vector<1x128xf32>
    %c0_13 = arith.constant 0 : index
    %c0_14 = arith.constant 0 : index
    %21 = vector.load %arg6[%c0_13, %c0_14] : memref<1x128xf32, #tpu.memory_space<vmem>>, vector<1x128xf32>
    tpu.vector_store %arg6[%c0_13, %c0_14], %20 {strides = array<i32>} : memref<1x128xf32, #tpu.memory_space<vmem>>, vector<1x128xf32>,
    return
  }
  func.func @transform_0(%arg0: i32) -> (i32, i32) {
    %c0_i32 = arith.constant 0 : i32
    %c0_i32_0 = arith.constant 0 : i32
    return %c0_i32, %arg0 : i32, i32
  }
  func.func @transform_1(%arg0: i32) -> (i32, i32) {
    %c0_i32 = arith.constant 0 : i32
    %c0_i32_0 = arith.constant 0 : i32
    %c0_i32_1 = arith.constant 0 : i32
    return %c0_i32, %c0_i32_0 : i32, i32
  }
  func.func @transform_2(%arg0: i32) -> (i32, i32) {
    %c0_i32 = arith.constant 0 : i32
    %c0_i32_0 = arith.constant 0 : i32
    %c0_i32_1 = arith.constant 0 : i32
    return %c0_i32, %c0_i32_0 : i32, i32
  }
  func.func @transform_3(%arg0: i32) -> (i32, i32) {
    %c0_i32 = arith.constant 0 : i32
    %c0_i32_0 = arith.constant 0 : i32
    %c0_i32_1 = arith.constant 0 : i32
    return %c0_i32, %c0_i32_0 : i32, i32
  }
  func.func @transform_4(%arg0: i32) -> (i32, i32) {
    %c0_i32 = arith.constant 0 : i32
    %c0_i32_0 = arith.constant 0 : i32
    %c0_i32_1 = arith.constant 0 : i32
    return %c0_i32, %c0_i32_0 : i32, i32
  }
  func.func @transform_5(%arg0: i32) -> (i32, i32) {
    %c0_i32 = arith.constant 0 : i32
    %c0_i32_0 = arith.constant 0 : i32
    return %c0_i32, %arg0 : i32, i32
  }
}

</mosaic_0001>

<llo_original>
// kernel: tpu_custom_call.1
$region0: #{tpu_custom_call.1}
  #allocation0 [shape = 'u32[]', space=smem, size = 0x4, offset = 0x4, fixed_abs, tag = 'smem constant byte address 0x4 - core index']
  #allocation1 [shape = 'u32[144,128]{1,0:T(1,128)}', space=vmem, size = 0x12000, scoped, tag = 'internal scratch']
  #allocation2 [shape = 'f32[1,1]{1,0:T(1,128)S(6)}', space=smem, size = 0x200, scoped, tag = 'scoped memory for tpu_custom_call.1']
  %s0 = inlined_call_operand.vmem [shape: bf16[32,128], index: 0, kind: input, shape index: {}]
  %s1 = inlined_call_operand.vmem [shape: bf16[256,32], index: 1, kind: input, shape index: {}]
  %s2 = inlined_call_operand.vmem [shape: f32[256,1], index: 2, kind: input, shape index: {}]
  %s3 = inlined_call_operand.vmem [shape: bf16[8,256], index: 3, kind: input, shape index: {}]
  %s4 = inlined_call_operand.<no memory space> [shape: f32[1,1], index: 4, kind: input, shape index: {}]
  %s5 = inlined_call_operand.hbm [shape: f32[1,128], index: 5, kind: output, shape index: {}]
  %s6 = sld [smem:[#allocation0]]
  $region30: #{tpu_custom_call.1} parent=0
    _
  %s8 = ssub.s32 1, %s6
  %s9 = scalar_select 0, %s8, %s6
  %10 = sst [smem:[#allocation2]] %s4
  $region1: #{tpu_custom_call.1} parent=0
    #allocation3 [shape = 'u8[512]{0}', space=vmem, size = 0x400, scoped, tag = 'output window, operand 0, single buffered']
    #allocation4 [shape = 's32[1]{0}', space=sflag, size = 0x4, scoped, tag = 'scoped memory for tpu_custom_call.1']
    %11 = vsyncpa [#allocation4], 0
    // Predicated region
    $region2: #{tpu_custom_call.1} parent=1 // pred_check
      _
    $region3: #{tpu_custom_call.1} parent=1 // pred_check_branch
      %13 = sbr.rel (0) target = $region5
    $region4: #{tpu_custom_call.1} parent=1 // pred_region
      _
    $region5: #{tpu_custom_call.1} parent=1 // pred_fallthru
      _
    // Predicated region
    $region6: #{tpu_custom_call.1} parent=1 // pred_check
      _
    $region7: #{tpu_custom_call.1} parent=1 // pred_check_branch
      %15 = sbr.rel (0) target = $region9
    $region8: #{tpu_custom_call.1} parent=1 // pred_region
      _
    $region9: #{tpu_custom_call.1} parent=1 // pred_fallthru
      _
    // Predicated region
    $region10: #{tpu_custom_call.1} parent=1 // pred_check
      _
    $region11: #{tpu_custom_call.1} parent=1 // pred_check_branch
      %17 = sbr.rel (0) target = $region13
    $region12: #{tpu_custom_call.1} parent=1 // pred_region
      _
    $region13: #{tpu_custom_call.1} parent=1 // pred_fallthru
      _
    // Predicated region
    $region14: #{tpu_custom_call.1} parent=1 // pred_check
      _
    $region15: #{tpu_custom_call.1} parent=1 // pred_check_branch
      %19 = sbr.rel (0) target = $region17
    $region16: #{tpu_custom_call.1} parent=1 // pred_region
      _
    $region17: #{tpu_custom_call.1} parent=1 // pred_fallthru
      _
    // Predicated region
    $region18: #{tpu_custom_call.1} parent=1 // pred_check
      _
    $region19: #{tpu_custom_call.1} parent=1 // pred_check_branch
      %21 = sbr.rel (0) target = $region21
    $region20: #{tpu_custom_call.1} parent=1 // pred_region
      _
    $region21: #{tpu_custom_call.1} parent=1 // pred_fallthru
      _
    %v23 = vld [vmem:[%s1] sm:$0xf]
    %v24 = vld [vmem:[%s1 + $0x4] sm:$0xf]
    %v25 = vld [vmem:[%s1 + $0x8] sm:$0xf]
    %v26 = vld [vmem:[%s1 + $0xc] sm:$0xf]
    %v27 = vld [vmem:[%s1 + $0x10] sm:$0xf]
    %v28 = vld [vmem:[%s1 + $0x14] sm:$0xf]
    %v29 = vld [vmem:[%s1 + $0x18] sm:$0xf]
    %v30 = vld [vmem:[%s1 + $0x1c] sm:$0xf]
    %v31 = vld [vmem:[%s1 + $0x20] sm:$0xf]
    %v32 = vld [vmem:[%s1 + $0x24] sm:$0xf]
    %v33 = vld [vmem:[%s1 + $0x28] sm:$0xf]
    %v34 = vld [vmem:[%s1 + $0x2c] sm:$0xf]
    %v35 = vld [vmem:[%s1 + $0x30] sm:$0xf]
    %v36 = vld [vmem:[%s1 + $0x34] sm:$0xf]
    %v37 = vld [vmem:[%s1 + $0x38] sm:$0xf]
    %v38 = vld [vmem:[%s1 + $0x3c] sm:$0xf]
    %v39 = vld [vmem:[%s1 + $0x40] sm:$0xf]
    %v40 = vld [vmem:[%s1 + $0x44] sm:$0xf]
    %v41 = vld [vmem:[%s1 + $0x48] sm:$0xf]
    %v42 = vld [vmem:[%s1 + $0x4c] sm:$0xf]
    %v43 = vld [vmem:[%s1 + $0x50] sm:$0xf]
    %v44 = vld [vmem:[%s1 + $0x54] sm:$0xf]
    %v45 = vld [vmem:[%s1 + $0x58] sm:$0xf]
    %v46 = vld [vmem:[%s1 + $0x5c] sm:$0xf]
    %v47 = vld [vmem:[%s1 + $0x60] sm:$0xf]
    %v48 = vld [vmem:[%s1 + $0x64] sm:$0xf]
    %v49 = vld [vmem:[%s1 + $0x68] sm:$0xf]
    %v50 = vld [vmem:[%s1 + $0x6c] sm:$0xf]
    %v51 = vld [vmem:[%s1 + $0x70] sm:$0xf]
    %v52 = vld [vmem:[%s1 + $0x74] sm:$0xf]
    %v53 = vld [vmem:[%s1 + $0x78] sm:$0xf]
    %v54 = vld [vmem:[%s1 + $0x7c] sm:$0xf]
    %v55 = vld [vmem:[%s0] sm:$0xf]
    %v56 = vld [vmem:[%s0 + $0x4] sm:$0xf]
    %v57 = vld [vmem:[%s0 + $0x8] sm:$0xf]
    %v58 = vld [vmem:[%s0 + $0xc] sm:$0xf]
    %v59 = vld [vmem:[%s2] sm:$0xff]
    %v60 = vld [vmem:[%s2 + $0x8] sm:$0xff]
    %v61 = vld [vmem:[%s2 + $0x10] sm:$0xff]
    %v62 = vld [vmem:[%s2 + $0x18] sm:$0xff]
    %v63 = vld [vmem:[%s2 + $0x20] sm:$0xff]
    %v64 = vld [vmem:[%s2 + $0x28] sm:$0xff]
    %v65 = vld [vmem:[%s2 + $0x30] sm:$0xff]
    %v66 = vld [vmem:[%s2 + $0x38] sm:$0xff]
    %v67 = vld [vmem:[%s2 + $0x40] sm:$0xff]
    %v68 = vld [vmem:[%s2 + $0x48] sm:$0xff]
    %v69 = vld [vmem:[%s2 + $0x50] sm:$0xff]
    %v70 = vld [vmem:[%s2 + $0x58] sm:$0xff]
    %v71 = vld [vmem:[%s2 + $0x60] sm:$0xff]
    %v72 = vld [vmem:[%s2 + $0x68] sm:$0xff]
    %v73 = vld [vmem:[%s2 + $0x70] sm:$0xff]
    %v74 = vld [vmem:[%s2 + $0x78] sm:$0xff]
    %v75 = vld [vmem:[%s2 + $0x80] sm:$0xff]
    %v76 = vld [vmem:[%s2 + $0x88] sm:$0xff]
    %v77 = vld [vmem:[%s2 + $0x90] sm:$0xff]
    %v78 = vld [vmem:[%s2 + $0x98] sm:$0xff]
    %v79 = vld [vmem:[%s2 + $0xa0] sm:$0xff]
    %v80 = vld [vmem:[%s2 + $0xa8] sm:$0xff]
    %v81 = vld [vmem:[%s2 + $0xb0] sm:$0xff]
    %v82 = vld [vmem:[%s2 + $0xb8] sm:$0xff]
    %v83 = vld [vmem:[%s2 + $0xc0] sm:$0xff]
    %v84 = vld [vmem:[%s2 + $0xc8] sm:$0xff]
    %v85 = vld [vmem:[%s2 + $0xd0] sm:$0xff]
    %v86 = vld [vmem:[%s2 + $0xd8] sm:$0xff]
    %v87 = vld [vmem:[%s2 + $0xe0] sm:$0xff]
    %v88 = vld [vmem:[%s2 + $0xe8] sm:$0xff]
    %v89 = vld [vmem:[%s2 + $0xf0] sm:$0xff]
    %v90 = vld [vmem:[%s2 + $0xf8] sm:$0xff]
    %92 = vset.pattern.permute.xlu0 0
    %93 = vperm.xlu0 %92, %v59
    %v94 = vpop.permute.xlu0 %93
    %97 = vset.pattern.permute.xlu0 0
    %98 = vperm.xlu0 %97, %v60
    %v99 = vpop.permute.xlu0 %98
    %102 = vset.pattern.permute.xlu0 0
    %103 = vperm.xlu0 %102, %v61
    %v104 = vpop.permute.xlu0 %103
    %107 = vset.pattern.permute.xlu0 0
    %108 = vperm.xlu0 %107, %v62
    %v109 = vpop.permute.xlu0 %108
    %112 = vset.pattern.permute.xlu0 0
    %113 = vperm.xlu0 %112, %v63
    %v114 = vpop.permute.xlu0 %113
    %117 = vset.pattern.permute.xlu0 0
    %118 = vperm.xlu0 %117, %v64
    %v119 = vpop.permute.xlu0 %118
    %122 = vset.pattern.permute.xlu0 0
    %123 = vperm.xlu0 %122, %v65
    %v124 = vpop.permute.xlu0 %123
    %127 = vset.pattern.permute.xlu0 0
    %128 = vperm.xlu0 %127, %v66
    %v129 = vpop.permute.xlu0 %128
    %132 = vset.pattern.permute.xlu0 0
    %133 = vperm.xlu0 %132, %v67
    %v134 = vpop.permute.xlu0 %133
    %137 = vset.pattern.permute.xlu0 0
    %138 = vperm.xlu0 %137, %v68
    %v139 = vpop.permute.xlu0 %138
    %142 = vset.pattern.permute.xlu0 0
    %143 = vperm.xlu0 %142, %v69
    %v144 = vpop.permute.xlu0 %143
    %147 = vset.pattern.permute.xlu0 0
    %148 = vperm.xlu0 %147, %v70
    %v149 = vpop.permute.xlu0 %148
    %152 = vset.pattern.permute.xlu0 0
    %153 = vperm.xlu0 %152, %v71
    %v154 = vpop.permute.xlu0 %153
    %157 = vset.pattern.permute.xlu0 0
    %158 = vperm.xlu0 %157, %v72
    %v159 = vpop.permute.xlu0 %158
    %162 = vset.pattern.permute.xlu0 0
    %163 = vperm.xlu0 %162, %v73
    %v164 = vpop.permute.xlu0 %163
    %167 = vset.pattern.permute.xlu0 0
    %168 = vperm.xlu0 %167, %v74
    %v169 = vpop.permute.xlu0 %168
    %172 = vset.pattern.permute.xlu0 0
    %173 = vperm.xlu0 %172, %v75
    %v174 = vpop.permute.xlu0 %173
    %177 = vset.pattern.permute.xlu0 0
    %178 = vperm.xlu0 %177, %v76
    %v179 = vpop.permute.xlu0 %178
    %182 = vset.pattern.permute.xlu0 0
    %183 = vperm.xlu0 %182, %v77
    %v184 = vpop.permute.xlu0 %183
    %187 = vset.pattern.permute.xlu0 0
    %188 = vperm.xlu0 %187, %v78
    %v189 = vpop.permute.xlu0 %188
    %192 = vset.pattern.permute.xlu0 0
    %193 = vperm.xlu0 %192, %v79
    %v194 = vpop.permute.xlu0 %193
    %197 = vset.pattern.permute.xlu0 0
    %198 = vperm.xlu0 %197, %v80
    %v199 = vpop.permute.xlu0 %198
    %202 = vset.pattern.permute.xlu0 0
    %203 = vperm.xlu0 %202, %v81
    %v204 = vpop.permute.xlu0 %203
    %207 = vset.pattern.permute.xlu0 0
    %208 = vperm.xlu0 %207, %v82
    %v209 = vpop.permute.xlu0 %208
    %212 = vset.pattern.permute.xlu0 0
    %213 = vperm.xlu0 %212, %v83
    %v214 = vpop.permute.xlu0 %213
    %217 = vset.pattern.permute.xlu0 0
    %218 = vperm.xlu0 %217, %v84
    %v219 = vpop.permute.xlu0 %218
    %222 = vset.pattern.permute.xlu0 0
    %223 = vperm.xlu0 %222, %v85
    %v224 = vpop.permute.xlu0 %223
    %227 = vset.pattern.permute.xlu0 0
    %228 = vperm.xlu0 %227, %v86
    %v229 = vpop.permute.xlu0 %228
    %232 = vset.pattern.permute.xlu0 0
    %233 = vperm.xlu0 %232, %v87
    %v234 = vpop.permute.xlu0 %233
    %237 = vset.pattern.permute.xlu0 0
    %238 = vperm.xlu0 %237, %v88
    %v239 = vpop.permute.xlu0 %238
    %242 = vset.pattern.permute.xlu0 0
    %243 = vperm.xlu0 %242, %v89
    %v244 = vpop.permute.xlu0 %243
    %247 = vset.pattern.permute.xlu0 0
    %248 = vperm.xlu0 %247, %v90
    %v249 = vpop.permute.xlu0 %248
    %v283 = vunpack.c.l.b16 %v23
    %v284 = vunpack.c.l.b16 %v24
    %v285 = vunpack.c.l.b16 %v25
    %v286 = vunpack.c.l.b16 %v26
    %v287 = vunpack.c.l.b16 %v27
    %v288 = vunpack.c.l.b16 %v28
    %v289 = vunpack.c.l.b16 %v29
    %v290 = vunpack.c.l.b16 %v30
    %v291 = vunpack.c.l.b16 %v31
    %v292 = vunpack.c.l.b16 %v32
    %v293 = vunpack.c.l.b16 %v33
    %v294 = vunpack.c.l.b16 %v34
    %v295 = vunpack.c.l.b16 %v35
    %v296 = vunpack.c.l.b16 %v36
    %v297 = vunpack.c.l.b16 %v37
    %v298 = vunpack.c.l.b16 %v38
    %v299 = vunpack.c.l.b16 %v39
    %v300 = vunpack.c.l.b16 %v40
    %v301 = vunpack.c.l.b16 %v41
    %v302 = vunpack.c.l.b16 %v42
    %v303 = vunpack.c.l.b16 %v43
    %v304 = vunpack.c.l.b16 %v44
    %v305 = vunpack.c.l.b16 %v45
    %v306 = vunpack.c.l.b16 %v46
    %v307 = vunpack.c.l.b16 %v47
    %v308 = vunpack.c.l.b16 %v48
    %v309 = vunpack.c.l.b16 %v49
    %v310 = vunpack.c.l.b16 %v50
    %v311 = vunpack.c.l.b16 %v51
    %v312 = vunpack.c.l.b16 %v52
    %v313 = vunpack.c.l.b16 %v53
    %v314 = vunpack.c.l.b16 %v54
    %v315 = vpack.c.b16 %v284, %v283
    %v316 = vpack.c.b16 %v286, %v285
    %v317 = vpack.c.b16 %v288, %v287
    %v318 = vpack.c.b16 %v290, %v289
    %v319 = vpack.c.b16 %v292, %v291
    %v320 = vpack.c.b16 %v294, %v293
    %v321 = vpack.c.b16 %v296, %v295
    %v322 = vpack.c.b16 %v298, %v297
    %v323 = vpack.c.b16 %v300, %v299
    %v324 = vpack.c.b16 %v302, %v301
    %v325 = vpack.c.b16 %v304, %v303
    %v326 = vpack.c.b16 %v306, %v305
    %v327 = vpack.c.b16 %v308, %v307
    %v328 = vpack.c.b16 %v310, %v309
    %v329 = vpack.c.b16 %v312, %v311
    %v330 = vpack.c.b16 %v314, %v313
    %v335 = vunpack.c.l.b16 %v55
    %v336 = vunpack.c.l.b16 %v56
    %v337 = vunpack.c.l.b16 %v57
    %v338 = vunpack.c.l.b16 %v58
    %v339 = vpack.c.b16 %v336, %v335
    %v340 = vpack.c.b16 %v338, %v337
    %vm343 = vcmask 261120
    %v345 = vsel %vm343, %v315, 0
    %v348 = vsel %vm343, %v316, 0
    %v351 = vsel %vm343, %v317, 0
    %v354 = vsel %vm343, %v318, 0
    %v357 = vsel %vm343, %v319, 0
    %v360 = vsel %vm343, %v320, 0
    %v363 = vsel %vm343, %v321, 0
    %v366 = vsel %vm343, %v322, 0
    %v369 = vsel %vm343, %v323, 0
    %v372 = vsel %vm343, %v324, 0
    %v375 = vsel %vm343, %v325, 0
    %v378 = vsel %vm343, %v326, 0
    %v381 = vsel %vm343, %v327, 0
    %v384 = vsel %vm343, %v328, 0
    %v387 = vsel %vm343, %v329, 0
    %v390 = vsel %vm343, %v330, 0
    %392 = vmatprep.subr.bf16.mxu0 0
    %393 = vmatpush1.bf16.msra.mxu0 %v339
    %394 = vmatprep.subr.bf16.mxu0 0
    %395 = vmatpush1.bf16.msra.mxu0 %v340
    %396 = vmatprep.subr.bf16.mxu0 0
    %397 = vmatpush1.bf16.msra.mxu0 0
    %398 = vmatprep.subr.bf16.mxu0 0
    %399 = vmatpush1.bf16.msra.mxu0 0
    %400 = vmatprep.subr.bf16.mxu0 0
    %401 = vmatpush1.bf16.msra.mxu0 0
    %402 = vmatprep.subr.bf16.mxu0 0
    %403 = vmatpush1.bf16.msra.mxu0 0
    %404 = vmatprep.subr.bf16.mxu0 0
    %405 = vmatpush1.bf16.msra.mxu0 0
    %406 = vmatprep.subr.bf16.mxu0 0
    %407 = vmatpush1.bf16.msra.mxu0 0
    %408 = vmatprep.subr.bf16.mxu0 0
    %409 = vmatpush1.bf16.msra.mxu0 0
    %410 = vmatprep.subr.bf16.mxu0 0
    %411 = vmatpush1.bf16.msra.mxu0 0
    %412 = vmatprep.subr.bf16.mxu0 0
    %413 = vmatpush1.bf16.msra.mxu0 0
    %414 = vmatprep.subr.bf16.mxu0 0
    %415 = vmatpush1.bf16.msra.mxu0 0
    %416 = vmatprep.subr.bf16.mxu0 0
    %417 = vmatpush1.bf16.msra.mxu0 0
    %418 = vmatprep.subr.bf16.mxu0 0
    %419 = vmatpush1.bf16.msra.mxu0 0
    %420 = vmatprep.subr.bf16.mxu0 0
    %421 = vmatpush1.bf16.msra.mxu0 0
    %422 = vmatprep.subr.bf16.mxu0 0
    %423 = vmatpush1.bf16.msra.mxu0 0
    %424 = vmatprep.mubr.bf16.mxu0 0
    %425 = vmatmul.mubr.bf16.gmra.mrb[0].mxu0 %v345
    %v426 = vpop.f32.mrb[0].mxu0
    %v427 = vadd.f32 %v94, %v426
    %v428 = vpop.f32.mrb[0].mxu0
    %v429 = vpop.f32.mrb[0].mxu0
    %v430 = vadd.f32 %v99, %v429
    %v431 = vpop.f32.mrb[0].mxu0
    %432 = vmatprep.mubr.bf16.mxu0 0
    %433 = vmatmul.mubr.bf16.gmra.mrb[0].mxu0 %v348
    %v434 = vpop.f32.mrb[0].mxu0
    %v435 = vadd.f32 %v104, %v434
    %v436 = vpop.f32.mrb[0].mxu0
    %v437 = vpop.f32.mrb[0].mxu0
    %v438 = vadd.f32 %v109, %v437
    %v439 = vpop.f32.mrb[0].mxu0
    %440 = vmatprep.mubr.bf16.mxu0 0
    %441 = vmatmul.mubr.bf16.gmra.mrb[0].mxu0 %v351
    %v442 = vpop.f32.mrb[0].mxu0
    %v443 = vadd.f32 %v114, %v442
    %v444 = vpop.f32.mrb[0].mxu0
    %v445 = vpop.f32.mrb[0].mxu0
    %v446 = vadd.f32 %v119, %v445
    %v447 = vpop.f32.mrb[0].mxu0
    %448 = vmatprep.mubr.bf16.mxu0 0
    %449 = vmatmul.mubr.bf16.gmra.mrb[0].mxu0 %v354
    %v450 = vpop.f32.mrb[0].mxu0
    %v451 = vadd.f32 %v124, %v450
    %v452 = vpop.f32.mrb[0].mxu0
    %v453 = vpop.f32.mrb[0].mxu0
    %v454 = vadd.f32 %v129, %v453
    %v455 = vpop.f32.mrb[0].mxu0
    %456 = vmatprep.mubr.bf16.mxu0 0
    %457 = vmatmul.mubr.bf16.gmra.mrb[0].mxu0 %v357
    %v458 = vpop.f32.mrb[0].mxu0
    %v459 = vadd.f32 %v134, %v458
    %v460 = vpop.f32.mrb[0].mxu0
    %v461 = vpop.f32.mrb[0].mxu0
    %v462 = vadd.f32 %v139, %v461
    %v463 = vpop.f32.mrb[0].mxu0
    %464 = vmatprep.mubr.bf16.mxu0 0
    %465 = vmatmul.mubr.bf16.gmra.mrb[0].mxu0 %v360
    %v466 = vpop.f32.mrb[0].mxu0
    %v467 = vadd.f32 %v144, %v466
    %v468 = vpop.f32.mrb[0].mxu0
    %v469 = vpop.f32.mrb[0].mxu0
    %v470 = vadd.f32 %v149, %v469
    %v471 = vpop.f32.mrb[0].mxu0
    %472 = vmatprep.mubr.bf16.mxu0 0
    %473 = vmatmul.mubr.bf16.gmra.mrb[0].mxu0 %v363
    %v474 = vpop.f32.mrb[0].mxu0
    %v475 = vadd.f32 %v154, %v474
    %v476 = vpop.f32.mrb[0].mxu0
    %v477 = vpop.f32.mrb[0].mxu0
    %v478 = vadd.f32 %v159, %v477
    %v479 = vpop.f32.mrb[0].mxu0
    %480 = vmatprep.mubr.bf16.mxu0 0
    %481 = vmatmul.mubr.bf16.gmra.mrb[0].mxu0 %v366
    %v482 = vpop.f32.mrb[0].mxu0
    %v483 = vadd.f32 %v164, %v482
    %v484 = vpop.f32.mrb[0].mxu0
    %v485 = vpop.f32.mrb[0].mxu0
    %v486 = vadd.f32 %v169, %v485
    %v487 = vpop.f32.mrb[0].mxu0
    %488 = vmatprep.mubr.bf16.mxu0 0
    %489 = vmatmul.mubr.bf16.gmra.mrb[0].mxu0 %v369
    %v490 = vpop.f32.mrb[0].mxu0
    %v491 = vadd.f32 %v174, %v490
    %v492 = vpop.f32.mrb[0].mxu0
    %v493 = vpop.f32.mrb[0].mxu0
    %v494 = vadd.f32 %v179, %v493
    %v495 = vpop.f32.mrb[0].mxu0
    %496 = vmatprep.mubr.bf16.mxu0 0
    %497 = vmatmul.mubr.bf16.gmra.mrb[0].mxu0 %v372
    %v498 = vpop.f32.mrb[0].mxu0
    %v499 = vadd.f32 %v184, %v498
    %v500 = vpop.f32.mrb[0].mxu0
    %v501 = vpop.f32.mrb[0].mxu0
    %v502 = vadd.f32 %v189, %v501
    %v503 = vpop.f32.mrb[0].mxu0
    %504 = vmatprep.mubr.bf16.mxu0 0
    %505 = vmatmul.mubr.bf16.gmra.mrb[0].mxu0 %v375
    %v506 = vpop.f32.mrb[0].mxu0
    %v507 = vadd.f32 %v194, %v506
    %v508 = vpop.f32.mrb[0].mxu0
    %v509 = vpop.f32.mrb[0].mxu0
    %v510 = vadd.f32 %v199, %v509
    %v511 = vpop.f32.mrb[0].mxu0
    %512 = vmatprep.mubr.bf16.mxu0 0
    %513 = vmatmul.mubr.bf16.gmra.mrb[0].mxu0 %v378
    %v514 = vpop.f32.mrb[0].mxu0
    %v515 = vadd.f32 %v204, %v514
    %v516 = vpop.f32.mrb[0].mxu0
    %v517 = vpop.f32.mrb[0].mxu0
    %v518 = vadd.f32 %v209, %v517
    %v519 = vpop.f32.mrb[0].mxu0
    %520 = vmatprep.mubr.bf16.mxu0 0
    %521 = vmatmul.mubr.bf16.gmra.mrb[0].mxu0 %v381
    %v522 = vpop.f32.mrb[0].mxu0
    %v523 = vadd.f32 %v214, %v522
    %v524 = vpop.f32.mrb[0].mxu0
    %v525 = vpop.f32.mrb[0].mxu0
    %v526 = vadd.f32 %v219, %v525
    %v527 = vpop.f32.mrb[0].mxu0
    %528 = vmatprep.mubr.bf16.mxu0 0
    %529 = vmatmul.mubr.bf16.gmra.mrb[0].mxu0 %v384
    %v530 = vpop.f32.mrb[0].mxu0
    %v531 = vadd.f32 %v224, %v530
    %v532 = vpop.f32.mrb[0].mxu0
    %v533 = vpop.f32.mrb[0].mxu0
    %v534 = vadd.f32 %v229, %v533
    %v535 = vpop.f32.mrb[0].mxu0
    %536 = vmatprep.mubr.bf16.mxu0 0
    %537 = vmatmul.mubr.bf16.gmra.mrb[0].mxu0 %v387
    %v538 = vpop.f32.mrb[0].mxu0
    %v539 = vadd.f32 %v234, %v538
    %v540 = vpop.f32.mrb[0].mxu0
    %v541 = vpop.f32.mrb[0].mxu0
    %v542 = vadd.f32 %v239, %v541
    %v543 = vpop.f32.mrb[0].mxu0
    %544 = vmatprep.mubr.bf16.mxu0 0
    %545 = vmatmul.mubr.bf16.gmra.mrb[0].mxu0 %v390
    %v546 = vpop.f32.mrb[0].mxu0
    %v547 = vadd.f32 %v244, %v546
    %v548 = vpop.f32.mrb[0].mxu0
    %v549 = vpop.f32.mrb[0].mxu0
    %v550 = vadd.f32 %v249, %v549
    %v551 = vpop.f32.mrb[0].mxu0
    %552 = vdwg.mxu0
    %v553 = vmax.f32 %v427, 0.0
    %v554 = vmax.f32 %v430, 0.0
    %v555 = vmax.f32 %v435, 0.0
    %v556 = vmax.f32 %v438, 0.0
    %v557 = vmax.f32 %v443, 0.0
    %v558 = vmax.f32 %v446, 0.0
    %v559 = vmax.f32 %v451, 0.0
    %v560 = vmax.f32 %v454, 0.0
    %v561 = vmax.f32 %v459, 0.0
    %v562 = vmax.f32 %v462, 0.0
    %v563 = vmax.f32 %v467, 0.0
    %v564 = vmax.f32 %v470, 0.0
    %v565 = vmax.f32 %v475, 0.0
    %v566 = vmax.f32 %v478, 0.0
    %v567 = vmax.f32 %v483, 0.0
    %v568 = vmax.f32 %v486, 0.0
    %v569 = vmax.f32 %v491, 0.0
    %v570 = vmax.f32 %v494, 0.0
    %v571 = vmax.f32 %v499, 0.0
    %v572 = vmax.f32 %v502, 0.0
    %v573 = vmax.f32 %v507, 0.0
    %v574 = vmax.f32 %v510, 0.0
    %v575 = vmax.f32 %v515, 0.0
    %v576 = vmax.f32 %v518, 0.0
    %v577 = vmax.f32 %v523, 0.0
    %v578 = vmax.f32 %v526, 0.0
    %v579 = vmax.f32 %v531, 0.0
    %v580 = vmax.f32 %v534, 0.0
    %v581 = vmax.f32 %v539, 0.0
    %v582 = vmax.f32 %v542, 0.0
    %v583 = vmax.f32 %v547, 0.0
    %v584 = vmax.f32 %v550, 0.0
    %v585 = vld [vmem:[%s3] sm:$0xff]
    %v586 = vpack.c.bf16 %v554, %v553
    %v587 = vpack.c.bf16 %v556, %v555
    %v588 = vpack.c.bf16 %v558, %v557
    %v589 = vpack.c.bf16 %v560, %v559
    %v590 = vpack.c.bf16 %v562, %v561
    %v591 = vpack.c.bf16 %v564, %v563
    %v592 = vpack.c.bf16 %v566, %v565
    %v593 = vpack.c.bf16 %v568, %v567
    %v594 = vpack.c.bf16 %v570, %v569
    %v595 = vpack.c.bf16 %v572, %v571
    %v596 = vpack.c.bf16 %v574, %v573
    %v597 = vpack.c.bf16 %v576, %v575
    %v598 = vpack.c.bf16 %v578, %v577
    %v599 = vpack.c.bf16 %v580, %v579
    %v600 = vpack.c.bf16 %v582, %v581
    %v601 = vpack.c.bf16 %v584, %v583
    %v603 = vunpack.c.l.b16 %v585
    %v604 = vunpack.c.h.b16 %v585
    %v605 = vpack.c.b16 %v603, %v603
    %v606 = vpack.c.b16 %v604, %v604
    %609 = vmatprep.subr.bf16.mxu0 0
    %610 = vmatpush1.bf16.msra.mxu0 %v586
    %611 = vmatprep.subr.bf16.mxu0 0
    %612 = vmatpush1.bf16.msra.mxu0 %v587
    %613 = vmatprep.subr.bf16.mxu0 0
    %614 = vmatpush1.bf16.msra.mxu0 %v588
    %615 = vmatprep.subr.bf16.mxu0 0
    %616 = vmatpush1.bf16.msra.mxu0 %v589
    %617 = vmatprep.subr.bf16.mxu0 0
    %618 = vmatpush1.bf16.msra.mxu0 %v590
    %619 = vmatprep.subr.bf16.mxu0 0
    %620 = vmatpush1.bf16.msra.mxu0 %v591
    %621 = vmatprep.subr.bf16.mxu0 0
    %622 = vmatpush1.bf16.msra.mxu0 %v592
    %623 = vmatprep.subr.bf16.mxu0 0
    %624 = vmatpush1.bf16.msra.mxu0 %v593
    %625 = vmatprep.subr.bf16.mxu0 0
    %626 = vmatpush1.bf16.msra.mxu0 %v594
    %627 = vmatprep.subr.bf16.mxu0 0
    %628 = vmatpush1.bf16.msra.mxu0 %v595
    %629 = vmatprep.subr.bf16.mxu0 0
    %630 = vmatpush1.bf16.msra.mxu0 %v596
    %631 = vmatprep.subr.bf16.mxu0 0
    %632 = vmatpush1.bf16.msra.mxu0 %v597
    %633 = vmatprep.subr.bf16.mxu0 0
    %634 = vmatpush1.bf16.msra.mxu0 %v598
    %635 = vmatprep.subr.bf16.mxu0 0
    %636 = vmatpush1.bf16.msra.mxu0 %v599
    %637 = vmatprep.subr.bf16.mxu0 0
    %638 = vmatpush1.bf16.msra.mxu0 %v600
    %639 = vmatprep.subr.bf16.mxu0 0
    %640 = vmatpush1.bf16.msra.mxu0 %v601
    %641 = vmatprep.mubr.bf16.mxu0 %v606
    %642 = vmatmul.mubr.bf16.gmra.mrb[0].mxu0 %v605
    %v643 = vpop.f32.mrb[0].mxu0
    %v644 = vadd.f32 0.0, %v643
    %v645 = vpop.f32.mrb[0].mxu0
    %v646 = vpop.f32.mrb[0].mxu0
    %v647 = vpop.f32.mrb[0].mxu0
    %648 = vdwg.mxu0
    %s649 = sld [smem:[#allocation2]]
    %v650 = vstv %s649
    %v651 = vadd.f32 %v644, %v650
    %v652 = vsub.f32 0.0, %v651
    %v653 = vmul.f32 %v652, 1.442695
    %v654 = vpow.pop %v653
    %v655 = vadd.f32 %v654, 1.0
    %v656 = vrcp.pop %v655
    %657 = vst [vmem:[#allocation3] sm:$0x1] %v656
    // Predicated region
    $region22: #{tpu_custom_call.1} parent=1 // pred_check
      _
    $region23: #{tpu_custom_call.1} parent=1 // pred_check_branch
      %659 = sbr.rel (0) target = $region25
    $region24: #{tpu_custom_call.1} parent=1 // pred_region
      %s661 = ssub.s32 16, 16
      %662 = vsyncadd [#allocation4], %s661
      %s664 = sshll.u32 [#allocation3], 4
      %s665 = int_to_ptr.vmem [resolvable:$true] %s664
      %667 = dma.vmem_to_hbm [thread:$0]  %s665, 16, %s5, [#allocation4]
    $region25: #{tpu_custom_call.1} parent=1 // pred_fallthru
      _
    // Predicated region
    $region26: #{tpu_custom_call.1} parent=1 // pred_check
      _
    $region27: #{tpu_custom_call.1} parent=1 // pred_check_branch
      %669 = sbr.rel (0) target = $region29
    $region28: #{tpu_custom_call.1} parent=1 // pred_region
      %670 = dma.done [#allocation4], 16
    $region29: #{tpu_custom_call.1} parent=1 // pred_fallthru
      _
    %671 = vsyncpa [#allocation4], 1

</llo_original>
